<compile_context>
chip_gen: v6e
topology: v6e:2x2x1
jax: 0.10.0
libtpu: 0.0.40
codegen_flags: <defaults>
</compile_context>

<pallas_src>
import functools

import numpy as np

import jax
import jax.numpy as jnp
from jax.experimental import pallas as pl
from jax.experimental.pallas import tpu as pltpu

_MIB = 1024 * 1024


def _interp_matrix(in_size: int, out_size: int) -> np.ndarray:
    """PyTorch align_corners=False linear interpolation matrix (out_size, in_size)."""
    o = np.arange(out_size, dtype=np.float64)
    src = np.maximum((o + 0.5) * (in_size / out_size) - 0.5, 0.0)
    i0 = np.minimum(np.floor(src).astype(np.int64), in_size - 1)
    i1 = np.minimum(i0 + 1, in_size - 1)
    w1 = src - i0
    w0 = 1.0 - w1
    m = np.zeros((out_size, in_size), dtype=np.float64)
    rows = np.arange(out_size)
    m[rows, i0] += w0
    m[rows, i1] += w1
    return m


def _tpu_vmem_info():
    """Returns (physical VMEM bytes, assumed #TensorCores sharing the grid)."""
    try:
        cap = int(pltpu.get_tpu_info().vmem_capacity_bytes)
    except Exception:  # unknown backend / interpret mode -> conservative defaults
        cap = 64 * _MIB
    # v7x: 64 MiB per TC, 2 TCs/chip (megacore).  v5e/v6e: 128 MiB, single TC.
    cores = 2 if cap <= 64 * _MIB else 1
    return cap, cores


def _sublanes(itemsize: int) -> int:
    return max(8, 32 // itemsize)  # f32 -> 8, bf16 -> 16, int8 -> 32


def _divisors(n: int):
    return [d for d in range(1, n + 1) if n % d == 0]


def _pick_block_batch(B, D, Do, HW, HoWo, io_itemsize, compute_itemsize,
                      vmem_budget, num_cores):
    """Largest divisor of B whose full per-step working set fits the VMEM budget.

    Prefers (tb*Do) % 128 == 0 (MXU M alignment) and, on multi-TC chips, a grid
    length that is a multiple of the core count.  Returns None if nothing fits.
    """
    whw_bytes = HW * HoWo * compute_itemsize

    def fits(tb):
        in_tile = tb * D * HW * io_itemsize
        out_tile = tb * Do * HoWo * io_itemsize
        wd_bytes = (tb * Do) * (tb * D) * compute_itemsize
        # Double-buffered pipeline buffers (inputs, outputs, weights) plus live
        # f32 intermediates (cast input, depth result, pre-cast output).
        interm = (tb * D * HW + tb * Do * HW + tb * Do * HoWo) * 4
        return 2 * (in_tile + out_tile + wd_bytes + whw_bytes) + interm <= vmem_budget

    def ok(tb):
        if not fits(tb):
            return False
        if tb * D > max(D, 1024):   # bound block-diagonal depth-weight waste
            return False
        if tb != B:                 # full-array blocks are always layout-legal
            if (tb * D) % _sublanes(io_itemsize) != 0:
                return False
            if (tb * Do) % _sublanes(io_itemsize) != 0:
                return False
        return True

    cands = [tb for tb in _divisors(B) if ok(tb)]
    if not cands:
        return None

    def pick(pool):
        aligned = [tb for tb in pool if (tb * Do) % 128 == 0]
        return max(aligned) if aligned else max(pool)

    if num_cores > 1 and B >= num_cores:
        multi = [tb for tb in cands
                 if (B // tb) >= num_cores and (B // tb) % num_cores == 0]
        if multi:
            return pick(multi)
    return pick(cands)


def _trilinear_kernel(x_ref, wd_ref, whw_ref, o_ref):
    # x_ref:   (TB*D,  HW)      TB flattened N*C slices, depth-major rows
    # wd_ref:  (TB*Do, TB*D)    block-diagonal kron(I_TB, wd) depth weight
    # whw_ref: (HW,    Ho*Wo)   fused height/width weight kron(wh, ww).T
    # o_ref:   (TB*Do, Ho*Wo)   lane-dense output rows
    cdt = wd_ref.dtype
    x = x_ref[...].astype(cdt)
    # Depth pass: a single big-M matmul (M = TB*Do), f32 accumulation.
    t = jnp.dot(wd_ref[...], x, preferred_element_type=jnp.float32)
    # Fused H/W pass: contraction on the trailing dim, result already in the
    # final lane-dense output layout (no transposes / relayouts).
    out = jnp.dot(t.astype(cdt), whw_ref[...], preferred_element_type=jnp.float32)
    o_ref[...] = out.astype(o_ref.dtype)


def _separable_upsample_xla(x: jnp.ndarray, scale: int) -> jnp.ndarray:
    """Separable XLA fallback for shapes whose fused H/W weight exceeds VMEM."""
    N, C, D, H, W = x.shape
    f32 = jnp.float32
    wd = jnp.asarray(_interp_matrix(D, D * scale), dtype=f32)
    wh = jnp.asarray(_interp_matrix(H, H * scale), dtype=f32)
    ww = jnp.asarray(_interp_matrix(W, W * scale), dtype=f32)
    t = jnp.einsum("ncdhw,ew->ncdhe", x.astype(f32), ww)
    t = jnp.einsum("ncdhe,fh->ncdfe", t, wh)
    t = jnp.einsum("ncdfe,gd->ncgfe", t, wd)
    return t.astype(x.dtype)


@functools.partial(jax.jit, static_argnames=("scale",))
def pre_upsample(x: jnp.ndarray, scale: int = 2) -> jnp.ndarray:
    """Trilinear upsample by `scale` along D, H, W. x: (N, C, D, H, W)."""
    N, C, D, H, W = x.shape
    Do, Ho, Wo = D * scale, H * scale, W * scale
    B, HW, HoWo = N * C, H * W, Ho * Wo

    # Scale-2 trilinear weights (0.25 / 0.75) are exact in bf16; keep bf16 inputs
    # in bf16 (half the VMEM footprint, native MXU path) with f32 accumulation.
    compute_dtype = jnp.bfloat16 if x.dtype == jnp.bfloat16 else jnp.float32
    compute_itemsize = jnp.dtype(compute_dtype).itemsize

    vmem_cap, num_cores = _tpu_vmem_info()
    vmem_limit = int(vmem_cap * 0.75)      # ~96 MiB on v5e/v6e, ~48 MiB on v7x
    vmem_budget = int(vmem_limit * 0.85)   # headroom for Mosaic internal scratch

    tb = _pick_block_batch(B, D, Do, HW, HoWo, x.dtype.itemsize,
                           compute_itemsize, vmem_budget, num_cores)
    if tb is None:
        # TODO(synk): fused kron(wh, ww) weight is O((H*W)^2) bytes and does not
        # fit VMEM at this H*W; implement a separable / halo-tiled Pallas kernel.
        return _separable_upsample_xla(x, scale)

    wd = _interp_matrix(D, Do)
    wh = _interp_matrix(H, Ho)
    ww = _interp_matrix(W, Wo)
    # Compile-time constant weights (constant block indices -> DMA'd once).
    wd_big = jnp.asarray(np.kron(np.eye(tb), wd), dtype=compute_dtype)   # (tb*Do, tb*D)
    whw = jnp.asarray(np.kron(wh, ww).T.copy(), dtype=compute_dtype)     # (HW, HoWo)

    x2 = x.reshape(B * D, HW)   # contiguous, free reshape

    out2 = pl.pallas_call(
        _trilinear_kernel,
        out_shape=jax.ShapeDtypeStruct((B * Do, HoWo), x.dtype),
        grid_spec=pltpu.PrefetchScalarGridSpec(
            num_scalar_prefetch=0,
            grid=(B // tb,),
            in_specs=[
                pl.BlockSpec((tb * D, HW), lambda b: (b, 0)),
                pl.BlockSpec((tb * Do, tb * D), lambda b: (0, 0)),
                pl.BlockSpec((HW, HoWo), lambda b: (0, 0)),
            ],
            # Lane-dense output: unmasked stores whenever HoWo % 128 == 0
            # (i.e. H*W % 32 == 0); other sizes are correct but use masked vst.
            out_specs=pl.BlockSpec((tb * Do, HoWo), lambda b: (b, 0)),
        ),
        compiler_params=pltpu.CompilerParams(
            dimension_semantics=("parallel",),
            vmem_limit_bytes=vmem_limit,
        ),
    )(x2, wd_big, whw)

    return out2.reshape(N, C, Do, Ho, Wo)


def _reference_trilinear(x: jnp.ndarray, scale: int = 2) -> jnp.ndarray:
    """Pure-JAX reference (full-precision separable matmuls)."""
    N, C, D, H, W = x.shape
    f32 = jnp.float32
    wd = jnp.asarray(_interp_matrix(D, D * scale), dtype=f32)
    wh = jnp.asarray(_interp_matrix(H, H * scale), dtype=f32)
    ww = jnp.asarray(_interp_matrix(W, W * scale), dtype=f32)
    hp = jax.lax.Precision.HIGHEST
    t = jnp.einsum("ncdhw,ew->ncdhe", x.astype(f32), ww, precision=hp)
    t = jnp.einsum("ncdhe,fh->ncdfe", t, wh, precision=hp)
    t = jnp.einsum("ncdfe,gd->ncgfe", t, wd, precision=hp)
    return t.astype(x.dtype)


if __name__ == "__main__":
    key = jax.random.PRNGKey(0)
    # nn.Upsample with a 3-tuple scale_factor requires 5D NCDHW input.
    x = jax.random.normal(key, (2, 4, 8, 8, 8), dtype=jnp.float32)

    out = pre_upsample(x, scale=2)
    out = jax.block_until_ready(out)

    assert out.shape == (2, 4, 16, 16, 16), out.shape
    ref = _reference_trilinear(x, scale=2)
    err = float(jnp.max(jnp.abs(out.astype(jnp.float32) - ref.astype(jnp.float32))))
    assert err < 2e-4, f"mismatch vs reference, max abs err = {err}"

    print("KERNEL_OK")
</pallas_src>

<mosaic_0001>
module attributes {stable_mosaic.version = 11 : i64} {
  func.func @_trilinear_kernel(%arg0: i32, %arg1: memref<32x64xf32, #tpu.memory_space<vmem>>, %arg2: memref<64x32xf32, #tpu.memory_space<vmem>>, %arg3: memref<64x256xf32, #tpu.memory_space<vmem>>, %arg4: memref<64x256xf32, #tpu.memory_space<vmem>>) attributes {dimension_semantics = [#tpu.dimension_semantics<parallel>], iteration_bounds = array<i64: 2>, scalar_prefetch = 0 : i64, scratch_operands = 0 : i64, tpu.core_type = #tpu.core_type<tc>, window_params = [{transform_indices = @transform_0, window_bounds = array<i64: 32, 64>}, {pipeline_mode = #tpu.pipeline_mode<synchronous>, transform_indices = @transform_1, window_bounds = array<i64: 64, 32>}, {pipeline_mode = #tpu.pipeline_mode<synchronous>, transform_indices = @transform_2, window_bounds = array<i64: 64, 256>}, {transform_indices = @transform_3, window_bounds = array<i64: 64, 256>}]} {
    %c0 = arith.constant 0 : index
    %c0_0 = arith.constant 0 : index
    %0 = vector.load %arg1[%c0, %c0_0] : memref<32x64xf32, #tpu.memory_space<vmem>>, vector<32x64xf32>
    %c0_1 = arith.constant 0 : index
    %c0_2 = arith.constant 0 : index
    %1 = vector.load %arg2[%c0_1, %c0_2] : memref<64x32xf32, #tpu.memory_space<vmem>>, vector<64x32xf32>
    %cst = arith.constant dense<0.000000e+00> : vector<64x64xf32>
    %2 = tpu.matmul %1, %0, %cst {dimension_numbers = #tpu.dot_dimension_numbers<[1], [0], [0], [1], [0, 0, 1, 1], [], []>} : vector<64x32xf32>, vector<32x64xf32>, vector<64x64xf32> -> vector<64x64xf32>
    %c0_3 = arith.constant 0 : index
    %c0_4 = arith.constant 0 : index
    %3 = vector.load %arg3[%c0_3, %c0_4] : memref<64x256xf32, #tpu.memory_space<vmem>>, vector<64x256xf32>
    %cst_5 = arith.constant dense<0.000000e+00> : vector<64x256xf32>
    %4 = tpu.matmul %2, %3, %cst_5 {dimension_numbers = #tpu.dot_dimension_numbers<[1], [0], [0], [1], [0, 0, 1, 1], [], []>} : vector<64x64xf32>, vector<64x256xf32>, vector<64x256xf32> -> vector<64x256xf32>
    %c0_6 = arith.constant 0 : index
    %c0_7 = arith.constant 0 : index
    %5 = vector.load %arg4[%c0_6, %c0_7] : memref<64x256xf32, #tpu.memory_space<vmem>>, vector<64x256xf32>
    tpu.vector_store %arg4[%c0_6, %c0_7], %4 {strides = array<i32>} : memref<64x256xf32, #tpu.memory_space<vmem>>, vector<64x256xf32>,
    return
  }
  func.func @transform_0(%arg0: i32) -> (i32, i32) {
    %c0_i32 = arith.constant 0 : i32
    %c0_i32_0 = arith.constant 0 : i32
    return %arg0, %c0_i32 : i32, i32
  }
  func.func @transform_1(%arg0: i32) -> (i32, i32) {
    %c0_i32 = arith.constant 0 : i32
    %c0_i32_0 = arith.constant 0 : i32
    %c0_i32_1 = arith.constant 0 : i32
    return %c0_i32, %c0_i32_0 : i32, i32
  }
  func.func @transform_2(%arg0: i32) -> (i32, i32) {
    %c0_i32 = arith.constant 0 : i32
    %c0_i32_0 = arith.constant 0 : i32
    %c0_i32_1 = arith.constant 0 : i32
    return %c0_i32, %c0_i32_0 : i32, i32
  }
  func.func @transform_3(%arg0: i32) -> (i32, i32) {
    %c0_i32 = arith.constant 0 : i32
    %c0_i32_0 = arith.constant 0 : i32
    return %arg0, %c0_i32 : i32, i32
  }
}

</mosaic_0001>

<llo_original>
// kernel: pre_upsample.1
$region0: #{pre_upsample.1}
  #allocation0 [shape = 'u32[]', space=smem, size = 0x4, offset = 0x4, fixed_abs, tag = 'smem constant byte address 0x4 - core index']
  #allocation1 [shape = 'u32[144,128]{1,0:T(1,128)}', space=vmem, size = 0x12000, scoped, tag = 'internal scratch']
  %s0 = inlined_call_operand.vmem [shape: f32[64,64], index: 0, kind: input, shape index: {}]
  %s1 = inlined_call_operand.vmem [shape: f32[64,32], index: 1, kind: input, shape index: {}]
  %s2 = inlined_call_operand.vmem [shape: f32[64,256], index: 2, kind: input, shape index: {}]
  %s3 = inlined_call_operand.vmem [shape: f32[128,256], index: 3, kind: output, shape index: {}]
  %s4 = sld [smem:[#allocation0]]
  $region45: #{pre_upsample.1} parent=0
    _
  %s6 = ssub.s32 1, %s4
  %s7 = scalar_select 0, %s6, %s4
  loop: start=0, step=1, limit=4
  $region2: #{pre_upsample.1} parent=0 // loop_pre_header
    _
  $region3: #{pre_upsample.1} parent=0 // loop_header
    %s9 = sphi 0, %s13
    %p10 = scmp.ge.s32.totalorder %s9, 4
    %s19 = sphi 0, %s21
    %s22 = sphi 0, %s19
    %s23 = sphi 0, %s22
    %s39 = sphi 0, %s23
    %s43 = sphi 0, %s43
    %s45 = sphi 0, %s43
    %s46 = sphi 0, %s45
    %s60 = sphi 0, %s46
    %s64 = sphi 0, %s64
    %s66 = sphi 0, %s64
    %s67 = sphi 0, %s66
    %s81 = sphi 0, %s67
    %s87 = sphi 0, %s89
    %s90 = sphi 0, %s87
    %s91 = sphi 0, %s90
    %s107 = sphi 0, %s91
  $region4: #{pre_upsample.1} parent=0 // loop_header_branch
    %12 = sbr.rel (%p10) target = $region8
  $region5: #{pre_upsample.1} parent=0 // loop_body
    %s14 = ssub.s32 %s9, 1
    %s15 = ssub.s32 %s9, 2
    %s16 = sadd.s32 %s9, 1
    %s17 = ssub.s32 %s9, %s16
    %p18 = scmp.eq.s32.totalorder %s17, 0
    %s20 = sadd.s32 %s19, 1
    %s21 = scalar_select %p18, %s19, %s20
    %p24 = pneg %p18
    %p25 = scmp.eq.s32.totalorder %s9, 1
    %p26 = por %p24, %p25
    %p27 = scmp.ne.s32.totalorder %s19, %s22
    %p28 = scmp.eq.s32.totalorder %s9, 0
    %p29 = por %p27, %p28
    %p30 = scmp.ne.s32.totalorder %s19, %s22
    %p31 = scmp.eq.s32.totalorder %s14, 1
    %p32 = por %p30, %p31
    %p33 = scmp.ne.s32.totalorder %s22, %s23
    %p34 = scmp.eq.s32.totalorder %s14, 0
    %p35 = por %p33, %p34
    %p36 = scmp.ne.s32.totalorder %s22, %s23
    %p37 = scmp.eq.s32.totalorder %s15, 1
    %p38 = por %p36, %p37
    %p40 = scmp.ne.s32.totalorder %s23, %s39
    %p41 = scmp.eq.s32.totalorder %s15, 0
    %p42 = por %p40, %p41
    %s44 = sadd.s32 %s43, 1
    %p47 = scmp.eq.s32.totalorder %s9, 1
    %p48 = scmp.ne.s32.totalorder %s43, %s45
    %p49 = scmp.eq.s32.totalorder %s9, 0
    %p50 = por %p48, %p49
    %p51 = scmp.ne.s32.totalorder %s43, %s45
    %p52 = scmp.eq.s32.totalorder %s14, 1
    %p53 = por %p51, %p52
    %p54 = scmp.ne.s32.totalorder %s45, %s46
    %p55 = scmp.eq.s32.totalorder %s14, 0
    %p56 = por %p54, %p55
    %p57 = scmp.ne.s32.totalorder %s45, %s46
    %p58 = scmp.eq.s32.totalorder %s15, 1
    %p59 = por %p57, %p58
    %p61 = scmp.ne.s32.totalorder %s46, %s60
    %p62 = scmp.eq.s32.totalorder %s15, 0
    %p63 = por %p61, %p62
    %s65 = sadd.s32 %s64, 1
    %p68 = scmp.eq.s32.totalorder %s9, 1
    %p69 = scmp.ne.s32.totalorder %s64, %s66
    %p70 = scmp.eq.s32.totalorder %s9, 0
    %p71 = por %p69, %p70
    %p72 = scmp.ne.s32.totalorder %s64, %s66
    %p73 = scmp.eq.s32.totalorder %s14, 1
    %p74 = por %p72, %p73
    %p75 = scmp.ne.s32.totalorder %s66, %s67
    %p76 = scmp.eq.s32.totalorder %s14, 0
    %p77 = por %p75, %p76
    %p78 = scmp.ne.s32.totalorder %s66, %s67
    %p79 = scmp.eq.s32.totalorder %s15, 1
    %p80 = por %p78, %p79
    %p82 = scmp.ne.s32.totalorder %s67, %s81
    %p83 = scmp.eq.s32.totalorder %s15, 0
    %p84 = por %p82, %p83
    %s85 = ssub.s32 %s9, %s16
    %p86 = scmp.eq.s32.totalorder %s85, 0
    %s88 = sadd.s32 %s87, 1
    %s89 = scalar_select %p86, %s87, %s88
    %p92 = pneg %p86
    %p93 = scmp.eq.s32.totalorder %s9, 1
    %p94 = por %p92, %p93
    %p95 = scmp.ne.s32.totalorder %s87, %s90
    %p96 = scmp.eq.s32.totalorder %s9, 0
    %p97 = por %p95, %p96
    %p98 = scmp.ne.s32.totalorder %s87, %s90
    %p99 = scmp.eq.s32.totalorder %s14, 1
    %p100 = por %p98, %p99
    %p101 = scmp.ne.s32.totalorder %s90, %s91
    %p102 = scmp.eq.s32.totalorder %s14, 0
    %p103 = por %p101, %p102
    %p104 = scmp.ne.s32.totalorder %s90, %s91
    %p105 = scmp.eq.s32.totalorder %s15, 1
    %p106 = por %p104, %p105
    %p108 = scmp.ne.s32.totalorder %s91, %s107
    %p109 = scmp.eq.s32.totalorder %s15, 0
    %p110 = por %p108, %p109
    %p111 = scmp.le.s32.totalorder 1, %s9
    %p112 = scmp.lt.s32.totalorder %s9, 3
    %p113 = pnand %p111, %p112
    %p114 = pneg %p113
    // Predicated region
    $region9: #{pre_upsample.1} parent=5 // pred_check
      _
    $region10: #{pre_upsample.1} parent=5 // pred_check_branch
      %116 = sbr.rel (%p113) target = $region12
    $region11: #{pre_upsample.1} parent=5 // pred_region
      %s117 = ssub.s32 %s9, 1
      // Predicated region
      $region13: #{pre_upsample.1} parent=11 // pred_check
        %p118 = pneg %p56
      $region14: #{pre_upsample.1} parent=11 // pred_check_branch
        %120 = sbr.rel (%p118) target = $region16
      $region15: #{pre_upsample.1} parent=11 // pred_region
        _
      $region16: #{pre_upsample.1} parent=11 // pred_fallthru
        _
      // Predicated region
      $region17: #{pre_upsample.1} parent=11 // pred_check
        %p121 = pneg %p77
      $region18: #{pre_upsample.1} parent=11 // pred_check_branch
        %123 = sbr.rel (%p121) target = $region20
      $region19: #{pre_upsample.1} parent=11 // pred_region
        _
      $region20: #{pre_upsample.1} parent=11 // pred_fallthru
        _
    $region12: #{pre_upsample.1} parent=5 // pred_fallthru
      _
    %p124 = scmp.lt.s32.totalorder %s9, 2
    // Predicated region
    $region21: #{pre_upsample.1} parent=5 // pred_check
      %p125 = pneg %p124
    $region22: #{pre_upsample.1} parent=5 // pred_check_branch
      %127 = sbr.rel (%p125) target = $region24
    $region23: #{pre_upsample.1} parent=5 // pred_region
      // Predicated region
      $region25: #{pre_upsample.1} parent=23 // pred_check
        %p128 = pneg %p29
      $region26: #{pre_upsample.1} parent=23 // pred_check_branch
        %130 = sbr.rel (%p128) target = $region28
      $region27: #{pre_upsample.1} parent=23 // pred_region
        %s131 = smul.u32 4, %s9
        %p132 = scmp.lt.s32.totalorder %s131, 7
        %s133 = scalar_select %p132, %s131, 7
        %s134 = smul.addr %s133, 8
        %s135 = scalar_lea.vmem %s0, %s134
        %s136 = smul.u32 4, %s9
      $region28: #{pre_upsample.1} parent=23 // pred_fallthru
        _
    $region24: #{pre_upsample.1} parent=5 // pred_fallthru
      _
    %p137 = scmp.le.s32.totalorder 1, %s9
    %p138 = scmp.lt.s32.totalorder %s9, 3
    %p139 = pnand %p137, %p138
    %p140 = pneg %p139
    // Predicated region
    $region29: #{pre_upsample.1} parent=5 // pred_check
      _
    $region30: #{pre_upsample.1} parent=5 // pred_check_branch
      %142 = sbr.rel (%p139) target = $region32
    $region31: #{pre_upsample.1} parent=5 // pred_region
      %s143 = ssub.s32 %s9, 1
      %s144 = smul.u32 4, %s14
      %p145 = scmp.lt.s32.totalorder %s144, 7
      %s146 = scalar_select %p145, %s144, 7
      %s147 = smul.addr %s146, 8
      %s148 = scalar_lea.vmem %s0, %s147
      %p149 = pneg %p35
      %p150 = pneg %p32
      %p151 = pneg %p56
      %p152 = pneg %p53
      %p153 = pneg %p77
      %p154 = pneg %p74
      %p155 = pneg %p103
      %p156 = pneg %p100
      %s157 = smul.u32 8, %s14
      %p158 = scmp.lt.s32.totalorder %s157, 15
      %s159 = scalar_select %p158, %s157, 15
      %s160 = smul.addr %s159, 2
      %s161 = smul.addr %s160, 8
      %s162 = scalar_lea.vmem %s3, %s161
      %s163 = smul.u32 4, %s14
      %p164 = scmp.lt.s32.totalorder %s163, 7
      %s165 = scalar_select %p164, %s163, 7
      %s166 = smul.addr %s165, 8
      %s167 = scalar_lea.vmem %s0, %s166
      %s168 = smul.u32 4, %s14
      %s169 = smul.u32 8, %s14
      %p170 = scmp.lt.s32.totalorder %s169, 15
      %s171 = scalar_select %p170, %s169, 15
      %s172 = smul.addr %s171, 2
      %s173 = smul.addr %s172, 8
      %s174 = scalar_lea.vmem %s3, %s173
      %s175 = smul.u32 8, %s14
      %v176 = vld [vmem:[%s167] sm:$0xff]
      %v177 = vld [vmem:[%s167 + $0x8] sm:$0xff]
      %v178 = vld [vmem:[%s167 + $0x10] sm:$0xff]
      %v179 = vld [vmem:[%s167 + $0x18] sm:$0xff]
      %v180 = vld [vmem:[%s1] sm:$0xff]
      %v181 = vld [vmem:[%s1 + $0x8] sm:$0xff]
      %v182 = vld [vmem:[%s1 + $0x10] sm:$0xff]
      %v183 = vld [vmem:[%s1 + $0x18] sm:$0xff]
      %v184 = vld [vmem:[%s1 + $0x20] sm:$0xff]
      %v185 = vld [vmem:[%s1 + $0x28] sm:$0xff]
      %v186 = vld [vmem:[%s1 + $0x30] sm:$0xff]
      %v187 = vld [vmem:[%s1 + $0x38] sm:$0xff]
      %vm188 = vcmask 261120
      %v190 = vsel %vm188, %v180, 0
      %v193 = vsel %vm188, %v181, 0
      %v196 = vsel %vm188, %v182, 0
      %v199 = vsel %vm188, %v183, 0
      %v202 = vsel %vm188, %v184, 0
      %v205 = vsel %vm188, %v185, 0
      %v208 = vsel %vm188, %v186, 0
      %v211 = vsel %vm188, %v187, 0
      %213 = vmatprep.subr.mxu0 0.0
      %214 = vmatpush1.msra.mxu0 0.0
      %215 = vmatprep.subr.mxu0 0.0
      %216 = vmatpush1.msra.mxu0 0.0
      %217 = vmatprep.subr.mxu0 0.0
      %218 = vmatpush1.msra.mxu0 0.0
      %219 = vmatprep.subr.mxu0 0.0
      %220 = vmatpush1.msra.mxu0 0.0
      %221 = vmatprep.subr.mxu0 0.0
      %222 = vmatpush1.msra.mxu0 0.0
      %223 = vmatprep.subr.mxu0 0.0
      %224 = vmatpush1.msra.mxu0 0.0
      %225 = vmatprep.subr.mxu0 0.0
      %226 = vmatpush1.msra.mxu0 0.0
      %227 = vmatprep.subr.mxu0 0.0
      %228 = vmatpush1.msra.mxu0 0.0
      %229 = vmatprep.subr.mxu0 0.0
      %230 = vmatpush1.msra.mxu0 0.0
      %231 = vmatprep.subr.mxu0 0.0
      %232 = vmatpush1.msra.mxu0 0.0
      %233 = vmatprep.subr.mxu0 0.0
      %234 = vmatpush1.msra.mxu0 0.0
      %235 = vmatprep.subr.mxu0 0.0
      %236 = vmatpush1.msra.mxu0 0.0
      %237 = vmatprep.subr.mxu0 0.0
      %238 = vmatpush1.msra.mxu0 %v179
      %239 = vmatprep.subr.mxu0 0.0
      %240 = vmatpush1.msra.mxu0 %v178
      %241 = vmatprep.subr.mxu0 0.0
      %242 = vmatpush1.msra.mxu0 %v177
      %243 = vmatprep.subr.mxu0 0.0
      %244 = vmatpush1.msra.mxu0 %v176
      %245 = vmatprep.subr.mxu0 0.0
      %246 = vmatpush2.msra.mxu0 0.0
      %247 = vmatprep.subr.mxu0 0.0
      %248 = vmatpush2.msra.mxu0 0.0
      %249 = vmatprep.subr.mxu0 0.0
      %250 = vmatpush2.msra.mxu0 0.0
      %251 = vmatprep.subr.mxu0 0.0
      %252 = vmatpush2.msra.mxu0 0.0
      %253 = vmatprep.subr.mxu0 0.0
      %254 = vmatpush2.msra.mxu0 0.0
      %255 = vmatprep.subr.mxu0 0.0
      %256 = vmatpush2.msra.mxu0 0.0
      %257 = vmatprep.subr.mxu0 0.0
      %258 = vmatpush2.msra.mxu0 0.0
      %259 = vmatprep.subr.mxu0 0.0
      %260 = vmatpush2.msra.mxu0 0.0
      %261 = vmatprep.subr.mxu0 0.0
      %262 = vmatpush2.msra.mxu0 0.0
      %263 = vmatprep.subr.mxu0 0.0
      %264 = vmatpush2.msra.mxu0 0.0
      %265 = vmatprep.subr.mxu0 0.0
      %266 = vmatpush2.msra.mxu0 0.0
      %267 = vmatprep.subr.mxu0 0.0
      %268 = vmatpush2.msra.mxu0 0.0
      %269 = vmatprep.subr.mxu0 0.0
      %270 = vmatpush2.msra.mxu0 0.0
      %271 = vmatprep.subr.mxu0 0.0
      %272 = vmatpush2.msra.mxu0 0.0
      %273 = vmatprep.subr.mxu0 0.0
      %274 = vmatpush2.msra.mxu0 0.0
      %275 = vmatprep.subr.mxu0 0.0
      %276 = vmatpush2.msra.mxu0 0.0
      %277 = vmatprep.mubr.f32.mxu0 0.0
      %278 = vmatmul.mubr.f32.gmra.mxu0 %v190
      %v279 = vpop.f32.mrf.mxu0
      %v280 = vadd.f32 0.0, %v279
      %v281 = vpop.f32.mrf.mxu0
      %282 = vmatprep.mubr.f32.mxu0 0.0
      %283 = vmatmul.mubr.f32.gmra.mxu0 %v193
      %v284 = vpop.f32.mrf.mxu0
      %v285 = vadd.f32 0.0, %v284
      %v286 = vpop.f32.mrf.mxu0
      %287 = vmatprep.mubr.f32.mxu0 0.0
      %288 = vmatmul.mubr.f32.gmra.mxu0 %v196
      %v289 = vpop.f32.mrf.mxu0
      %v290 = vadd.f32 0.0, %v289
      %v291 = vpop.f32.mrf.mxu0
      %292 = vmatprep.mubr.f32.mxu0 0.0
      %293 = vmatmul.mubr.f32.gmra.mxu0 %v199
      %v294 = vpop.f32.mrf.mxu0
      %v295 = vadd.f32 0.0, %v294
      %v296 = vpop.f32.mrf.mxu0
      %297 = vmatprep.mubr.f32.mxu0 0.0
      %298 = vmatmul.mubr.f32.gmra.mxu0 %v202
      %v299 = vpop.f32.mrf.mxu0
      %v300 = vadd.f32 0.0, %v299
      %v301 = vpop.f32.mrf.mxu0
      %302 = vmatprep.mubr.f32.mxu0 0.0
      %303 = vmatmul.mubr.f32.gmra.mxu0 %v205
      %v304 = vpop.f32.mrf.mxu0
      %v305 = vadd.f32 0.0, %v304
      %v306 = vpop.f32.mrf.mxu0
      %307 = vmatprep.mubr.f32.mxu0 0.0
      %308 = vmatmul.mubr.f32.gmra.mxu0 %v208
      %v309 = vpop.f32.mrf.mxu0
      %v310 = vadd.f32 0.0, %v309
      %v311 = vpop.f32.mrf.mxu0
      %312 = vmatprep.mubr.f32.mxu0 0.0
      %313 = vmatmul.mubr.f32.gmra.mxu0 %v211
      %v314 = vpop.f32.mrf.mxu0
      %v315 = vadd.f32 0.0, %v314
      %v316 = vpop.f32.mrf.mxu0
      %317 = vdwg.mxu0
      %v318 = vld [vmem:[%s2] sm:$0xff]
      %v319 = vld [vmem:[%s2 + $0x8] sm:$0xff]
      %v320 = vld [vmem:[%s2 + $0x10] sm:$0xff]
      %v321 = vld [vmem:[%s2 + $0x18] sm:$0xff]
      %v322 = vld [vmem:[%s2 + $0x20] sm:$0xff]
      %v323 = vld [vmem:[%s2 + $0x28] sm:$0xff]
      %v324 = vld [vmem:[%s2 + $0x30] sm:$0xff]
      %v325 = vld [vmem:[%s2 + $0x38] sm:$0xff]
      %v326 = vld [vmem:[%s2 + $0x40] sm:$0xff]
      %v327 = vld [vmem:[%s2 + $0x48] sm:$0xff]
      %v328 = vld [vmem:[%s2 + $0x50] sm:$0xff]
      %v329 = vld [vmem:[%s2 + $0x58] sm:$0xff]
      %v330 = vld [vmem:[%s2 + $0x60] sm:$0xff]
      %v331 = vld [vmem:[%s2 + $0x68] sm:$0xff]
      %v332 = vld [vmem:[%s2 + $0x70] sm:$0xff]
      %v333 = vld [vmem:[%s2 + $0x78] sm:$0xff]
      %vm334 = vcmask 523264
      %v336 = vsel %vm334, %v280, 0
      %v339 = vsel %vm334, %v285, 0
      %v342 = vsel %vm334, %v290, 0
      %v345 = vsel %vm334, %v295, 0
      %v348 = vsel %vm334, %v300, 0
      %v351 = vsel %vm334, %v305, 0
      %v354 = vsel %vm334, %v310, 0
      %v357 = vsel %vm334, %v315, 0
      %359 = vmatprep.subr.mxu0 0.0
      %360 = vmatpush1.msra.mxu0 0.0
      %361 = vmatprep.subr.mxu0 0.0
      %362 = vmatpush1.msra.mxu0 0.0
      %363 = vmatprep.subr.mxu0 0.0
      %364 = vmatpush1.msra.mxu0 0.0
      %365 = vmatprep.subr.mxu0 0.0
      %366 = vmatpush1.msra.mxu0 0.0
      %367 = vmatprep.subr.mxu0 0.0
      %368 = vmatpush1.msra.mxu0 0.0
      %369 = vmatprep.subr.mxu0 0.0
      %370 = vmatpush1.msra.mxu0 0.0
      %371 = vmatprep.subr.mxu0 0.0
      %372 = vmatpush1.msra.mxu0 0.0
      %373 = vmatprep.subr.mxu0 0.0
      %374 = vmatpush1.msra.mxu0 0.0
      %375 = vmatprep.subr.mxu0 %v333
      %376 = vmatpush1.msra.mxu0 %v332
      %377 = vmatprep.subr.mxu0 %v331
      %378 = vmatpush1.msra.mxu0 %v330
      %379 = vmatprep.subr.mxu0 %v329
      %380 = vmatpush1.msra.mxu0 %v328
      %381 = vmatprep.subr.mxu0 %v327
      %382 = vmatpush1.msra.mxu0 %v326
      %383 = vmatprep.subr.mxu0 %v325
      %384 = vmatpush1.msra.mxu0 %v324
      %385 = vmatprep.subr.mxu0 %v323
      %386 = vmatpush1.msra.mxu0 %v322
      %387 = vmatprep.subr.mxu0 %v321
      %388 = vmatpush1.msra.mxu0 %v320
      %389 = vmatprep.subr.mxu0 %v319
      %390 = vmatpush1.msra.mxu0 %v318
      %391 = vmatprep.subr.mxu0 0.0
      %392 = vmatpush2.msra.mxu0 0.0
      %393 = vmatprep.subr.mxu0 0.0
      %394 = vmatpush2.msra.mxu0 0.0
      %395 = vmatprep.subr.mxu0 0.0
      %396 = vmatpush2.msra.mxu0 0.0
      %397 = vmatprep.subr.mxu0 0.0
      %398 = vmatpush2.msra.mxu0 0.0
      %399 = vmatprep.subr.mxu0 0.0
      %400 = vmatpush2.msra.mxu0 0.0
      %401 = vmatprep.subr.mxu0 0.0
      %402 = vmatpush2.msra.mxu0 0.0
      %403 = vmatprep.subr.mxu0 0.0
      %404 = vmatpush2.msra.mxu0 0.0
      %405 = vmatprep.subr.mxu0 0.0
      %406 = vmatpush2.msra.mxu0 0.0
      %407 = vmatprep.subr.mxu0 0.0
      %408 = vmatpush2.msra.mxu0 0.0
      %409 = vmatprep.subr.mxu0 0.0
      %410 = vmatpush2.msra.mxu0 0.0
      %411 = vmatprep.subr.mxu0 0.0
      %412 = vmatpush2.msra.mxu0 0.0
      %413 = vmatprep.subr.mxu0 0.0
      %414 = vmatpush2.msra.mxu0 0.0
      %415 = vmatprep.subr.mxu0 0.0
      %416 = vmatpush2.msra.mxu0 0.0
      %417 = vmatprep.subr.mxu0 0.0
      %418 = vmatpush2.msra.mxu0 0.0
      %419 = vmatprep.subr.mxu0 0.0
      %420 = vmatpush2.msra.mxu0 0.0
      %421 = vmatprep.subr.mxu0 0.0
      %422 = vmatpush2.msra.mxu0 0.0
      %423 = vmatprep.mubr.f32.mxu0 0.0
      %424 = vmatmul.mubr.f32.gmra.mxu0 %v336
      %v425 = vpop.f32.mrf.mxu0
      %v426 = vadd.f32 0.0, %v425
      %v427 = vpop.f32.mrf.mxu0
      %v428 = vadd.f32 0.0, %v427
      %429 = vmatprep.mubr.f32.mxu0 0.0
      %430 = vmatmul.mubr.f32.gmra.mxu0 %v339
      %v431 = vpop.f32.mrf.mxu0
      %v432 = vadd.f32 0.0, %v431
      %v433 = vpop.f32.mrf.mxu0
      %v434 = vadd.f32 0.0, %v433
      %435 = vmatprep.mubr.f32.mxu0 0.0
      %436 = vmatmul.mubr.f32.gmra.mxu0 %v342
      %v437 = vpop.f32.mrf.mxu0
      %v438 = vadd.f32 0.0, %v437
      %v439 = vpop.f32.mrf.mxu0
      %v440 = vadd.f32 0.0, %v439
      %441 = vmatprep.mubr.f32.mxu0 0.0
      %442 = vmatmul.mubr.f32.gmra.mxu0 %v345
      %v443 = vpop.f32.mrf.mxu0
      %v444 = vadd.f32 0.0, %v443
      %v445 = vpop.f32.mrf.mxu0
      %v446 = vadd.f32 0.0, %v445
      %447 = vmatprep.mubr.f32.mxu0 0.0
      %448 = vmatmul.mubr.f32.gmra.mxu0 %v348
      %v449 = vpop.f32.mrf.mxu0
      %v450 = vadd.f32 0.0, %v449
      %v451 = vpop.f32.mrf.mxu0
      %v452 = vadd.f32 0.0, %v451
      %453 = vmatprep.mubr.f32.mxu0 0.0
      %454 = vmatmul.mubr.f32.gmra.mxu0 %v351
      %v455 = vpop.f32.mrf.mxu0
      %v456 = vadd.f32 0.0, %v455
      %v457 = vpop.f32.mrf.mxu0
      %v458 = vadd.f32 0.0, %v457
      %459 = vmatprep.mubr.f32.mxu0 0.0
      %460 = vmatmul.mubr.f32.gmra.mxu0 %v354
      %v461 = vpop.f32.mrf.mxu0
      %v462 = vadd.f32 0.0, %v461
      %v463 = vpop.f32.mrf.mxu0
      %v464 = vadd.f32 0.0, %v463
      %465 = vmatprep.mubr.f32.mxu0 0.0
      %466 = vmatmul.mubr.f32.gmra.mxu0 %v357
      %v467 = vpop.f32.mrf.mxu0
      %v468 = vadd.f32 0.0, %v467
      %v469 = vpop.f32.mrf.mxu0
      %v470 = vadd.f32 0.0, %v469
      %471 = vdwg.mxu0
      %472 = vst [vmem:[%s174] sm:$0xff] %v426
      %473 = vst [vmem:[%s174 + $0x8] sm:$0xff] %v428
      %474 = vst [vmem:[%s174 + $0x10] sm:$0xff] %v432
      %475 = vst [vmem:[%s174 + $0x18] sm:$0xff] %v434
      %476 = vst [vmem:[%s174 + $0x20] sm:$0xff] %v438
      %477 = vst [vmem:[%s174 + $0x28] sm:$0xff] %v440
      %478 = vst [vmem:[%s174 + $0x30] sm:$0xff] %v444
      %479 = vst [vmem:[%s174 + $0x38] sm:$0xff] %v446
      %480 = vst [vmem:[%s174 + $0x40] sm:$0xff] %v450
      %481 = vst [vmem:[%s174 + $0x48] sm:$0xff] %v452
      %482 = vst [vmem:[%s174 + $0x50] sm:$0xff] %v456
      %483 = vst [vmem:[%s174 + $0x58] sm:$0xff] %v458
      %484 = vst [vmem:[%s174 + $0x60] sm:$0xff] %v462
      %485 = vst [vmem:[%s174 + $0x68] sm:$0xff] %v464
      %486 = vst [vmem:[%s174 + $0x70] sm:$0xff] %v468
      %487 = vst [vmem:[%s174 + $0x78] sm:$0xff] %v470
      %s488 = smul.u32 8, %s14
      %p489 = scmp.lt.s32.totalorder %s488, 15
      %s490 = scalar_select %p489, %s488, 15
      %s491 = smul.addr %s490, 2
      %s492 = smul.addr %s491, 8
      %s493 = scalar_lea.vmem %s3, %s492
      // Predicated region
      $region33: #{pre_upsample.1} parent=31 // pred_check
        %p494 = pneg %p100
      $region34: #{pre_upsample.1} parent=31 // pred_check_branch
        %496 = sbr.rel (%p494) target = $region36
      $region35: #{pre_upsample.1} parent=31 // pred_region
        %s497 = smul.u32 8, %s14
      $region36: #{pre_upsample.1} parent=31 // pred_fallthru
        _
    $region32: #{pre_upsample.1} parent=5 // pred_fallthru
      _
    %p498 = scmp.le.s32.totalorder 2, %s9
    // Predicated region
    $region37: #{pre_upsample.1} parent=5 // pred_check
      %p499 = pneg %p498
    $region38: #{pre_upsample.1} parent=5 // pred_check_branch
      %501 = sbr.rel (%p499) target = $region40
    $region39: #{pre_upsample.1} parent=5 // pred_region
      %s502 = ssub.s32 %s9, 2
      // Predicated region
      $region41: #{pre_upsample.1} parent=39 // pred_check
        %p503 = pneg %p106
      $region42: #{pre_upsample.1} parent=39 // pred_check_branch
        %505 = sbr.rel (%p503) target = $region44
      $region43: #{pre_upsample.1} parent=39 // pred_region
        %s506 = smul.u32 8, %s15
        %p507 = scmp.lt.s32.totalorder %s506, 15
        %s508 = scalar_select %p507, %s506, 15
        %s509 = smul.addr %s508, 2
        %s510 = smul.addr %s509, 8
        %s511 = scalar_lea.vmem %s3, %s510
      $region44: #{pre_upsample.1} parent=39 // pred_fallthru
        _
    $region40: #{pre_upsample.1} parent=5 // pred_fallthru
      _
  $region6: #{pre_upsample.1} parent=0 // loop_footer
    %s13 = sadd.s32 1, %s9
  $region7: #{pre_upsample.1} parent=0 // loop_footer_branch
    %8 = sbr.rel target = $region3
  $region8: #{pre_upsample.1} parent=0 // loop_exit
    _

</llo_original>
